<compile_context>
chip_gen: v6e
topology: v6e:2x2x1
jax: 0.10.0
libtpu: 0.0.40
codegen_flags: <defaults>
</compile_context>

<pallas_src>
import functools

import numpy as np
import jax
import jax.numpy as jnp
from jax import lax
from jax.experimental import pallas as pl
from jax.experimental.pallas import tpu as pltpu

_BIG = np.int32(1 << 30)     # "+inf" surrogate for int32 index tie-breaks
_NEG = np.float32(-1e30)     # finite "-inf" for padded vocab columns


# ----------------------------------------------------------------------------
# small planning helpers
# ----------------------------------------------------------------------------
def _vmem_limit_bytes():
    try:
        cap = int(pltpu.get_tpu_info().vmem_capacity_bytes)
    except Exception:
        cap = 64 * 1024 * 1024          # assume v7x-sized VMEM if unknown
    return min(cap * 3 // 4, 96 * 1024 * 1024)


def _compiler_params(dimension_semantics):
    return pltpu.CompilerParams(dimension_semantics=dimension_semantics,
                                vmem_limit_bytes=_vmem_limit_bytes())


def _round_up(x, m):
    return ((x + m - 1) // m) * m


def _plan_vocab(v, tile_cap=1024, tile_min=256):
    """Pick a vocab tile (multiple of 128, <= tile_cap) and a padded vocab.

    Prefers a divisor of round_up(v, 128) in [tile_min, tile_cap] (no padding);
    otherwise pads the vocab up to a multiple of the tile.  Never degrades to
    "whole vocab in one tile" for large v.
    """
    v128 = _round_up(max(v, 128), 128)
    tile_cap = max(128, (tile_cap // 128) * 128)
    tile_min = max(128, (tile_min // 128) * 128)
    if v128 <= tile_cap:
        return v128, v128
    for cand in range(tile_cap, tile_min - 1, -128):
        if v128 % cand == 0:
            return cand, v128
    return tile_cap, _round_up(v, tile_cap)


def _pad_projection(weight, bias, v_pad, weight_dtype=jnp.bfloat16):
    """Cast + pad the (H, V) weight / (V,) bias to v_pad columns ONCE.
    Padded bias columns are -1e30 so they never win the LSE or the top-K."""
    h, v = weight.shape
    w = weight.astype(weight_dtype)
    b = bias.reshape(1, v).astype(jnp.float32)
    if v_pad != v:
        w = jnp.pad(w, ((0, 0), (0, v_pad - v)))
        b = jnp.pad(b, ((0, 0), (0, v_pad - v)), constant_values=_NEG)
    return w, b


def _topk_value_index(scores, flat_idx, k):
    """Per-row top-k by value with lowest-flat-index tie-breaking; matches
    lax.top_k on the fully materialized (B, K*V) score matrix.  Runs on a tiny
    (B, n_split*K*K) candidate set in plain JAX."""
    vals, idxs = [], []
    s = scores
    for _ in range(k):
        best = jnp.max(s, axis=-1, keepdims=True)
        best_i = jnp.min(jnp.where(s == best, flat_idx, _BIG),
                         axis=-1, keepdims=True)
        vals.append(best)
        idxs.append(best_i)
        s = jnp.where(flat_idx == best_i, -jnp.inf, s)
    return jnp.concatenate(vals, axis=-1), jnp.concatenate(idxs, axis=-1)


# ----------------------------------------------------------------------------
# Kernel 1: _inflate  (torch.Tensor.repeat along one dim == tile n copies)
# ----------------------------------------------------------------------------
def _copy_kernel(x_ref, o_ref):
    o_ref[...] = x_ref[...]


def inflate_pallas(x, n_repeat: int, dim: int):
    """Equivalent of tensor.repeat([1,..,n_repeat,..,1]) along `dim`.

    Lane-dense (rows, cols) layout; the grid iterates source chunks on the
    outer axis so each chunk is DMA'd in once and written n_repeat times.
    NOTE: for the fused decode step we do NOT physically inflate -- beams read
    the same source block via the index_map (zero extra HBM traffic); this
    kernel exists because _inflate is part of the module API.
    """
    if n_repeat == 1:
        return x
    x_m = jnp.moveaxis(x, dim, 0)
    d0 = x_m.shape[0]
    rest = x_m.shape[1:]
    r = int(np.prod(rest)) if len(rest) else 1
    e = d0 * r

    c2 = 0
    for cand in (4096, 2048, 1024, 512, 256, 128):      # lane-dense last dim
        if e % cand == 0:
            c2 = cand
            break
    if c2 == 0:
        c2 = r if r else 1
    r2 = e // c2

    max_rows = max(8, (2 * 1024 * 1024) // max(1, c2 * x.dtype.itemsize))
    t_r = r2
    if r2 > max_rows and r2 % 8 == 0:
        t = (max_rows // 8) * 8
        while t >= 8 and r2 % t:
            t -= 8
        if t >= 8:
            t_r = t

    x2 = x_m.reshape(r2, c2)
    out3 = pl.pallas_call(
        _copy_kernel,
        out_shape=jax.ShapeDtypeStruct((n_repeat, r2, c2), x2.dtype),
        grid=(r2 // t_r, n_repeat),                      # source chunk outer
        in_specs=[pl.BlockSpec((t_r, c2), lambda j, i: (j, 0))],
        out_specs=pl.BlockSpec((None, t_r, c2), lambda j, i: (i, j, 0)),
        compiler_params=_compiler_params(("parallel", "parallel")),
    )(x2)
    out = out3.reshape((n_repeat * d0,) + rest)
    return jnp.moveaxis(out, 0, dim)


# ----------------------------------------------------------------------------
# Kernel 2: decoder.forward_step  (hidden @ W + b -> log_softmax over vocab)
#   vocab-streamed bf16 weight + online log-sum-exp; the output row block
#   stays VMEM-resident across the vocab tiles and is normalized at the end.
# ----------------------------------------------------------------------------
def _forward_step_kernel(h_ref, w_ref, b_ref, o_ref, m_sc, s_sc, *, tile_v):
    j = pl.program_id(1)
    nv = pl.num_programs(1)

    @pl.when(j == 0)
    def _init():
        m_sc[...] = jnp.full_like(m_sc, -jnp.inf)
        s_sc[...] = jnp.zeros_like(s_sc)

    logits = jnp.dot(h_ref[...], w_ref[...],
                     preferred_element_type=jnp.float32) + b_ref[...]
    start = pl.multiple_of(j * tile_v, tile_v)
    o_ref[:, pl.ds(start, tile_v)] = logits

    tile_max = jnp.max(logits, axis=-1, keepdims=True)
    m_new = jnp.maximum(m_sc[...], tile_max)
    s_sc[...] = (s_sc[...] * jnp.exp(m_sc[...] - m_new)
                 + jnp.sum(jnp.exp(logits - m_new), axis=-1, keepdims=True))
    m_sc[...] = m_new

    @pl.when(j == nv - 1)
    def _finalize():
        o_ref[...] = o_ref[...] - (m_sc[...] + jnp.log(s_sc[...]))


def forward_step_pallas(hidden, weight_p, bias_p, *, vocab_size=None,
                        tile_v=None, vmem_out_budget=24 << 20):
    """log_softmax(hidden @ W + b).  weight_p / bias_p may be pre-padded
    (columns beyond vocab_size carry bias = -1e30); returns (N, vocab_size)."""
    n, h = hidden.shape
    bias_p = bias_p.reshape(1, -1).astype(jnp.float32)
    v_pad = weight_p.shape[1]
    v = vocab_size if vocab_size is not None else v_pad
    if tile_v is None or v_pad % tile_v:
        tile_v, v_need = _plan_vocab(v_pad)
        if v_need != v_pad:
            weight_p, bias_p = _pad_projection(weight_p, bias_p.reshape(-1),
                                               v_need, weight_p.dtype)
            v_pad = v_need
    nv = v_pad // tile_v

    # Keep all rows resident when the (t_n, v_pad) f32 output block fits the
    # budget (always true for beam-search N = B*K); only then is the weight
    # streamed exactly once.  For huge N fall back to row tiling (weight is
    # then replayed per row block -- acknowledged, out of scope here).
    max_rows = max(8, vmem_out_budget // (v_pad * 4))
    if n <= max_rows:
        t_n, n_pad = n, n
    else:
        t_n = (max_rows // 8) * 8
        n_pad = _round_up(n, t_n)
    hidden_c = hidden.astype(weight_p.dtype)
    if n_pad != n:
        hidden_c = jnp.pad(hidden_c, ((0, n_pad - n), (0, 0)))

    out = pl.pallas_call(
        functools.partial(_forward_step_kernel, tile_v=tile_v),
        out_shape=jax.ShapeDtypeStruct((n_pad, v_pad), jnp.float32),
        grid=(n_pad // t_n, nv),
        in_specs=[
            pl.BlockSpec((t_n, h), lambda i, j: (i, 0)),
            pl.BlockSpec((h, tile_v), lambda i, j: (0, j)),
            pl.BlockSpec((1, tile_v), lambda i, j: (0, j)),
        ],
        out_specs=pl.BlockSpec((t_n, v_pad), lambda i, j: (i, 0)),
        scratch_shapes=[pltpu.VMEM((t_n, 1), jnp.float32),
                        pltpu.VMEM((t_n, 1), jnp.float32)],
        compiler_params=_compiler_params(("parallel", "arbitrary")),
    )(hidden_c, weight_p, bias_p)
    if n_pad != n or v_pad != v:
        out = out[:n, :v]
    return out


# ----------------------------------------------------------------------------
# Kernel 3 (fused): projection + online LSE + gated per-row top-K over the
#   vocab, weight streamed from HBM once per decode step, all B*K rows
#   resident.  The tiny (n_split, B*K, K) candidates + partial LSEs are merged
#   (score combine + final K*K*n_split -> K top-K) in a JAX epilogue.
# ----------------------------------------------------------------------------
def _fused_step_kernel(h_ref, w_ref, b_ref, lse_ref, cv_ref, ci_ref,
                       m_sc, s_sc, cand_v_sc, cand_i_sc,
                       *, beam_size, tile_v, nv_per_split):
    sp = pl.program_id(0)            # vocab split ("parallel" -> megacore)
    j = pl.program_id(1)             # vocab tile within the split
    n = cand_v_sc.shape[0]           # B*K rows
    k = beam_size

    @pl.when(j == 0)
    def _init():
        m_sc[...] = jnp.full_like(m_sc, -jnp.inf)
        s_sc[...] = jnp.zeros_like(s_sc)
        cand_v_sc[...] = jnp.full_like(cand_v_sc, -jnp.inf)
        cand_i_sc[...] = jnp.full_like(cand_i_sc, _BIG)

    # bf16 MXU matmul on this vocab tile, f32 accumulation.
    logits = jnp.dot(h_ref[...], w_ref[...],
                     preferred_element_type=jnp.float32) + b_ref[...]   # (N,tV)

    # online log-sum-exp across this split's vocab tiles
    tile_max = jnp.max(logits, axis=-1, keepdims=True)                  # (N,1)
    m_new = jnp.maximum(m_sc[...], tile_max)
    s_sc[...] = (s_sc[...] * jnp.exp(m_sc[...] - m_new)
                 + jnp.sum(jnp.exp(logits - m_new), axis=-1, keepdims=True))
    m_sc[...] = m_new

    # Running per-row top-K of raw logits (adding cum - lse later is a
    # per-row constant, so within-row order is preserved).  Gate: skip the
    # K-pass XLU/VALU merge when no row of this tile can beat its K-th best.
    kth = jnp.min(cand_v_sc[...], axis=-1, keepdims=True)               # (N,1)

    @pl.when(jnp.any(tile_max > kth))
    def _merge():
        v_start = (sp * nv_per_split + j) * tile_v
        tile_idx = v_start + lax.broadcasted_iota(jnp.int32, (n, tile_v), 1)
        tile_vals = logits
        cand_v = cand_v_sc[...]
        cand_i = cand_i_sc[...]
        col = lax.broadcasted_iota(jnp.int32, (n, k), 1)
        new_v = jnp.full((n, k), -jnp.inf, jnp.float32)
        new_i = jnp.full((n, k), _BIG, jnp.int32)
        for r in range(k):                   # beam_size: small & static
            best = jnp.maximum(jnp.max(tile_vals, axis=1, keepdims=True),
                               jnp.max(cand_v, axis=1, keepdims=True))   # (N,1)
            # float-equality index recovery matches lax.top_k tie-breaking
            # (lowest index) for finite values; not NaN-safe by design.
            best_i = jnp.minimum(
                jnp.min(jnp.where(tile_vals == best, tile_idx, _BIG),
                        axis=1, keepdims=True),
                jnp.min(jnp.where(cand_v == best, cand_i, _BIG),
                        axis=1, keepdims=True))                          # (N,1)
            new_v = jnp.where(col == r, best, new_v)
            new_i = jnp.where(col == r, best_i, new_i)
            tile_vals = jnp.where(tile_idx == best_i, -jnp.inf, tile_vals)
            cand_v = jnp.where(cand_i == best_i, -jnp.inf, cand_v)
        cand_v_sc[...] = new_v
        cand_i_sc[...] = new_i

    @pl.when(j == nv_per_split - 1)
    def _finalize():
        lse_ref[...] = m_sc[...] + jnp.log(s_sc[...])
        cv_ref[...] = cand_v_sc[...]
        ci_ref[...] = cand_i_sc[...]


def fused_step_topk_pallas(hidden_bkh, weight_p, bias_p, cumulative_ps, *,
                           vocab_size, tile_v, n_split=None):
    """top-K over beam*vocab of cumulative_ps[:, :, None] +
    log_softmax(hidden @ W + b), never materializing the (B*K, V) log-probs.
    Returns (vals (B, K), flat idx (B, K) into K*V), matching lax.top_k."""
    b, k, h = hidden_bkh.shape
    n = b * k
    bias_p = bias_p.reshape(1, -1).astype(jnp.float32)
    v_pad = weight_p.shape[1]
    assert v_pad % tile_v == 0, "weight must be pre-padded to the vocab tile"
    nv = v_pad // tile_v
    if n_split is None:
        n_split = 2 if (nv >= 2 and nv % 2 == 0) else 1   # v7x: one half/TC
    nv_per_split = nv // n_split

    hidden2 = hidden_bkh.reshape(n, h).astype(weight_p.dtype)

    kern = functools.partial(_fused_step_kernel, beam_size=k, tile_v=tile_v,
                             nv_per_split=nv_per_split)
    lse_p, cv_p, ci_p = pl.pallas_call(
        kern,
        out_shape=(jax.ShapeDtypeStruct((n_split, n, 1), jnp.float32),
                   jax.ShapeDtypeStruct((n_split, n, k), jnp.float32),
                   jax.ShapeDtypeStruct((n_split, n, k), jnp.int32)),
        grid=(n_split, nv_per_split),
        in_specs=[
            # all B*K hidden rows resident for the whole grid (one DMA)
            pl.BlockSpec((n, h), lambda s, j: (0, 0)),
            # the (H, V) weight streams through VMEM exactly once per step
            pl.BlockSpec((h, tile_v),
                         lambda s, j: (0, s * nv_per_split + j)),
            pl.BlockSpec((1, tile_v),
                         lambda s, j: (0, s * nv_per_split + j)),
        ],
        out_specs=(
            pl.BlockSpec((None, n, 1), lambda s, j: (s, 0, 0)),
            pl.BlockSpec((None, n, k), lambda s, j: (s, 0, 0)),
            pl.BlockSpec((None, n, k), lambda s, j: (s, 0, 0)),
        ),
        scratch_shapes=[
            pltpu.VMEM((n, 1), jnp.float32),   # running max
            pltpu.VMEM((n, 1), jnp.float32),   # running sum(exp)
            pltpu.VMEM((n, k), jnp.float32),   # per-row top-K raw-logit values
            pltpu.VMEM((n, k), jnp.int32),     # per-row top-K vocab indices
        ],
        compiler_params=_compiler_params(("parallel", "arbitrary")),
    )(hidden2, weight_p, bias_p)

    # tiny JAX epilogue: merge splits' partial LSEs, combine beam scores,
    # final top-K over (B, n_split*K*K) candidates with index tie-breaking.
    lse = jax.scipy.special.logsumexp(lse_p[:, :, 0], axis=0)             # (N,)
    cum = cumulative_ps.reshape(n).astype(jnp.float32)
    scores = (cum - lse).reshape(1, n, 1) + cv_p                          # (S,N,K)
    beam = (jnp.arange(n, dtype=jnp.int32) % k).reshape(1, n, 1)
    flat = beam * np.int32(vocab_size) + ci_p                             # (S,N,K)
    scores = jnp.transpose(scores, (1, 0, 2)).reshape(b, n_split * k * k)
    flat = jnp.transpose(flat, (1, 0, 2)).reshape(b, n_split * k * k)
    return _topk_value_index(scores, flat, k)


# ----------------------------------------------------------------------------
# Synthetic decoder stand-in (kospeech injects a DecoderRNN; here a single
# deterministic projection + log-softmax plays the role of forward_step)
# ----------------------------------------------------------------------------
class PallasDecoderStub:
    def __init__(self, hidden_dim, vocab_size, key, sos_id=1, eos_id=2,
                 pad_id=0, tile_cap=1024, weight_dtype=jnp.bfloat16):
        kw, kb = jax.random.split(key)
        self.vocab_size = vocab_size
        w_f32 = 0.1 * jax.random.normal(kw, (hidden_dim, vocab_size),
                                        jnp.float32)
        b_f32 = 0.1 * jax.random.normal(kb, (vocab_size,), jnp.float32)
        # plan the vocab tiling + pad/cast the projection ONCE, not per step
        self.tile_v, self.v_pad = _plan_vocab(vocab_size, tile_cap=tile_cap)
        self.weight_p, self.bias_p = _pad_projection(w_f32, b_f32, self.v_pad,
                                                     weight_dtype)
        self.sos_id, self.eos_id, self.pad_id = sos_id, eos_id, pad_id
        # TODO(synk): int8 weight + per-column scale path for v5e/v6e MXU.

    def forward_step(self, hidden):
        return forward_step_pallas(hidden, self.weight_p, self.bias_p,
                                   vocab_size=self.vocab_size,
                                   tile_v=self.tile_v)

    def forward_step_topk(self, hidden_bkh, cumulative_ps):
        return fused_step_topk_pallas(hidden_bkh, self.weight_p, self.bias_p,
                                      cumulative_ps,
                                      vocab_size=self.vocab_size,
                                      tile_v=self.tile_v)


# ----------------------------------------------------------------------------
# JAX/Pallas port of kospeech BeamSearchBaseDecoder
# ----------------------------------------------------------------------------
class BeamSearchBaseDecoder:
    def __init__(self, decoder, beam_size: int, batch_size: int):
        self.decoder = decoder
        self.beam_size = beam_size
        self.sos_id = decoder.sos_id
        self.pad_id = decoder.pad_id
        self.eos_id = decoder.eos_id
        self.ongoing_beams = None
        self.cumulative_ps = None
        self.finished = [[] for _ in range(batch_size)]
        self.finished_ps = [[] for _ in range(batch_size)]
        self.forward_step = decoder.forward_step

    def _inflate(self, tensor, n_repeat: int, dim: int):
        return inflate_pallas(tensor, n_repeat, dim)

    def beam_search_step(self, hidden_bkh, cumulative_ps):
        """Fused forward_step + score combine + top-K over beam*vocab."""
        return self.decoder.forward_step_topk(hidden_bkh, cumulative_ps)

    def _is_all_finished(self, k: int) -> bool:
        return all(len(done) >= k for done in self.finished)

    def _fill_sequence(self, y_hats):
        max_length = max(int(y.shape[0]) for y in y_hats)
        rows = []
        for y in y_hats:
            pad = jnp.full((max_length - int(y.shape[0]),), int(self.pad_id),
                           jnp.int32)
            rows.append(jnp.concatenate([y.astype(jnp.int32), pad]))
        return jnp.stack(rows, axis=0)

    # TODO(synk): _get_successor / _get_hypothesis are data-dependent Python
    # recursion over ragged host-side lists; the numeric top-K they consume is
    # beam_search_step, the bookkeeping stays on the host.

    def forward(self, *args, **kwargs):
        raise NotImplementedError  # matches the reference module


if __name__ == "__main__":
    B, K, H, V = 2, 3, 64, 2560   # batch, beam, hidden, vocab

    key = jax.random.PRNGKey(0)
    k1, k2, k3, k4 = jax.random.split(key, 4)

    decoder = PallasDecoderStub(H, V, key=k1)
    searcher = BeamSearchBaseDecoder(decoder, beam_size=K, batch_size=B)

    hidden = jax.random.normal(k2, (B, H), jnp.float32)
    cumulative_ps = jax.random.normal(k3, (B, K), jnp.float32)
    # Per-beam decoder states (beams diverge after the first step).  Encoder
    # outputs / hidden are NOT physically inflated for the fused step: all
    # B*K rows sit in a single resident block and the weight streams once.
    hidden_bkh = hidden[:, None, :] + 0.1 * jax.random.normal(k4, (B, K, H),
                                                              jnp.float32)

    # --- kernel 1: _inflate (module API; torch repeat along dim 0) ---
    hidden_inf = searcher._inflate(hidden, K, 0)                    # (K*B, H)

    # --- kernel 2: decoder.forward_step (vocab-streamed bf16 matmul +
    #     online-LSE log_softmax, rows resident) ---
    step_lp = searcher.forward_step(hidden_bkh.reshape(B * K, H))   # (B*K, V)

    # --- kernel 3 (fused): projection + online LSE + gated running top-K,
    #     weight streamed once per step, tiny HBM outputs ---
    vals, idxs = searcher.beam_search_step(hidden_bkh, cumulative_ps)

    jax.block_until_ready((hidden_inf, step_lp, vals, idxs))

    # --- reference checks (plain JAX, same bf16 weight/activation cast) ---
    rows = hidden_bkh.reshape(B * K, H)
    w_ref = decoder.weight_p[:, :V].astype(jnp.float32)
    b_ref = decoder.bias_p[0, :V]
    h_ref = rows.astype(decoder.weight_p.dtype).astype(jnp.float32)
    ref_logits = jnp.dot(h_ref, w_ref, precision=lax.Precision.HIGHEST) + b_ref
    ref_lp = jax.nn.log_softmax(ref_logits, axis=-1)
    ref_inf = jnp.tile(hidden, (K, 1))
    ref_scores = (cumulative_ps[:, :, None]
                  + ref_lp.reshape(B, K, V)).reshape(B, K * V)
    ref_vals, ref_idxs = lax.top_k(ref_scores, K)

    assert np.allclose(np.asarray(hidden_inf), np.asarray(ref_inf))
    assert np.allclose(np.asarray(step_lp), np.asarray(ref_lp),
                       atol=2e-3, rtol=2e-3)
    assert np.allclose(np.asarray(vals), np.asarray(ref_vals),
                       atol=2e-3, rtol=2e-3)
    # exact index match expected; tolerate swaps only among numerically tied
    # scores (bf16 path correctness concern from the review)
    if not np.array_equal(np.asarray(idxs), np.asarray(ref_idxs)):
        picked = np.take_along_axis(np.asarray(ref_scores),
                                    np.asarray(idxs), axis=1)
        assert np.allclose(picked, np.asarray(ref_vals), atol=2e-3, rtol=2e-3)

    print("KERNEL_OK")
</pallas_src>

<mosaic_0001>
module attributes {stable_mosaic.version = 11 : i64} {
  func.func @_copy_kernel(%arg0: i32, %arg1: i32, %arg2: memref<1x128xf32, #tpu.memory_space<vmem>>, %arg3: memref<1x1x128xf32, #tpu.memory_space<vmem>>) attributes {dimension_semantics = [#tpu.dimension_semantics<parallel>, #tpu.dimension_semantics<parallel>], iteration_bounds = array<i64: 1, 3>, scalar_prefetch = 0 : i64, scratch_operands = 0 : i64, tpu.core_type = #tpu.core_type<tc>, window_params = [{transform_indices = @transform_0, window_bounds = array<i64: 1, 128>}, {transform_indices = @transform_1, window_bounds = array<i64: 1, 1, 128>}]} {
    %c0 = arith.constant 0 : index
    %c0_0 = arith.constant 0 : index
    %0 = vector.load %arg2[%c0, %c0_0] : memref<1x128xf32, #tpu.memory_space<vmem>>, vector<1x128xf32>
    %c0_1 = arith.constant 0 : index
    %c0_2 = arith.constant 0 : index
    %c0_3 = arith.constant 0 : index
    %1 = vector.load %arg3[%c0_1, %c0_2, %c0_3] : memref<1x1x128xf32, #tpu.memory_space<vmem>>, vector<1x1x128xf32>
    %2 = vector.shape_cast %1 : vector<1x1x128xf32> to vector<1x128xf32>
    %3 = vector.shape_cast %0 : vector<1x128xf32> to vector<1x1x128xf32>
    tpu.vector_store %arg3[%c0_1, %c0_2, %c0_3], %3 {strides = array<i32>} : memref<1x1x128xf32, #tpu.memory_space<vmem>>, vector<1x1x128xf32>,
    return
  }
  func.func @transform_0(%arg0: i32, %arg1: i32) -> (i32, i32) {
    %c0_i32 = arith.constant 0 : i32
    %c0_i32_0 = arith.constant 0 : i32
    return %arg0, %c0_i32 : i32, i32
  }
  func.func @transform_1(%arg0: i32, %arg1: i32) -> (i32, i32, i32) {
    %c0_i32 = arith.constant 0 : i32
    %c0_i32_0 = arith.constant 0 : i32
    return %arg1, %arg0, %c0_i32 : i32, i32, i32
  }
}

</mosaic_0001>

<llo_original>
// kernel: tpu_custom_call.1
$region0: #{tpu_custom_call.1}
  #allocation0 [shape = 'u32[]', space=smem, size = 0x4, offset = 0x4, fixed_abs, tag = 'smem constant byte address 0x4 - core index']
  #allocation1 [shape = 'u32[144,128]{1,0:T(1,128)}', space=vmem, size = 0x12000, scoped, tag = 'internal scratch']
  %s0 = inlined_call_operand.hbm [shape: f32[1,128], index: 0, kind: input, shape index: {}]
  %s1 = inlined_call_operand.hbm [shape: f32[3,1,128], index: 1, kind: output, shape index: {}]
  %s2 = sld [smem:[#allocation0]]
  $region41: #{tpu_custom_call.1} parent=0
    _
  %s4 = ssub.s32 1, %s2
  %s5 = scalar_select 0, %s4, %s2
  $region1: #{tpu_custom_call.1} parent=0
    #allocation2 [shape = 'u8[512]{0}', space=vmem, size = 0x400, scoped, tag = 'input window, operand 0, single buffered']
    #allocation3 [shape = 's32[2]{0}', space=sflag, size = 0x8, scoped, tag = 'scoped memory for tpu_custom_call.1']
    #allocation4 [shape = 's32[2]{0}', space=sflag, size = 0x8, scoped, tag = 'scoped memory for tpu_custom_call.1']
    #allocation5 [shape = 'u8[1024]{0}', space=vmem, size = 0x400, scoped, tag = 'output window, operand 0']
    %6 = vsyncpa [#allocation3], 0
    %7 = vsyncpa [#allocation4], 0
    %s8 = scalar_lea.sflag [#allocation4], 1
    %9 = vsyncpa %s8, 0
    loop: start=0, step=1, limit=5
    $region2: #{tpu_custom_call.1} parent=1 // loop_pre_header
      _
    $region3: #{tpu_custom_call.1} parent=1 // loop_header
      %s11 = sphi 0, %s15
      %p12 = scmp.ge.s32.totalorder %s11, 5
      %s18 = sphi 0, %s30
      %s19 = sphi 0, %s26
      %s20 = sphi 0, %s18
      %s21 = sphi 0, %s19
      %s22 = sphi 0, %s20
      %s23 = sphi 0, %s21
      %s33 = sphi 0, %s35
      %s36 = sphi 0, %s33
      %s37 = sphi 0, %s36
      %s53 = sphi 0, %s37
      %s61 = sphi 0, %s63
      %s64 = sphi 0, %s61
      %s65 = sphi 0, %s64
      %s81 = sphi 0, %s65
    $region4: #{tpu_custom_call.1} parent=1 // loop_header_branch
      %14 = sbr.rel (%p12) target = $region8
    $region5: #{tpu_custom_call.1} parent=1 // loop_body
      %s16 = ssub.s32 %s11, 1
      %s17 = ssub.s32 %s11, 2
      %s24 = sadd.s32 1, %s19
      %p25 = scmp.ge.s32.totalorder %s24, 3
      %s26 = scalar_select %p25, 0, %s24
      %s27 = sadd.s32 1, %s18
      %s28 = scalar_select %p25, %s27, %s18
      %p29 = scmp.ge.s32.totalorder %s28, 1
      %s30 = scalar_select %p29, 0, %s28
      %s31 = ssub.s32 %s18, %s30
      %p32 = scmp.eq.s32.totalorder %s31, 0
      %s34 = sadd.s32 %s33, 1
      %s35 = scalar_select %p32, %s33, %s34
      %p38 = pneg %p32
      %p39 = scmp.eq.s32.totalorder %s11, 2
      %p40 = por %p38, %p39
      %p41 = scmp.ne.s32.totalorder %s33, %s36
      %p42 = scmp.eq.s32.totalorder %s11, 0
      %p43 = por %p41, %p42
      %p44 = scmp.ne.s32.totalorder %s33, %s36
      %p45 = scmp.eq.s32.totalorder %s16, 2
      %p46 = por %p44, %p45
      %p47 = scmp.ne.s32.totalorder %s36, %s37
      %p48 = scmp.eq.s32.totalorder %s16, 0
      %p49 = por %p47, %p48
      %p50 = scmp.ne.s32.totalorder %s36, %s37
      %p51 = scmp.eq.s32.totalorder %s17, 2
      %p52 = por %p50, %p51
      %p54 = scmp.ne.s32.totalorder %s37, %s53
      %p55 = scmp.eq.s32.totalorder %s17, 0
      %p56 = por %p54, %p55
      %s57 = ssub.s32 %s19, %s26
      %s58 = ssub.s32 %s18, %s30
      %s59 = sor.u32 %s57, %s58
      %p60 = scmp.eq.s32.totalorder %s59, 0
      %s62 = sadd.s32 %s61, 1
      %s63 = scalar_select %p60, %s61, %s62
      %p66 = pneg %p60
      %p67 = scmp.eq.s32.totalorder %s11, 2
      %p68 = por %p66, %p67
      %p69 = scmp.ne.s32.totalorder %s61, %s64
      %p70 = scmp.eq.s32.totalorder %s11, 0
      %p71 = por %p69, %p70
      %p72 = scmp.ne.s32.totalorder %s61, %s64
      %p73 = scmp.eq.s32.totalorder %s16, 2
      %p74 = por %p72, %p73
      %p75 = scmp.ne.s32.totalorder %s64, %s65
      %p76 = scmp.eq.s32.totalorder %s16, 0
      %p77 = por %p75, %p76
      %p78 = scmp.ne.s32.totalorder %s64, %s65
      %p79 = scmp.eq.s32.totalorder %s17, 2
      %p80 = por %p78, %p79
      %p82 = scmp.ne.s32.totalorder %s65, %s81
      %p83 = scmp.eq.s32.totalorder %s17, 0
      %p84 = por %p82, %p83
      %p85 = scmp.le.s32.totalorder 1, %s11
      %p86 = scmp.lt.s32.totalorder %s11, 4
      %p87 = pnand %p85, %p86
      %p88 = pneg %p87
      // Predicated region
      $region9: #{tpu_custom_call.1} parent=5 // pred_check
        _
      $region10: #{tpu_custom_call.1} parent=5 // pred_check_branch
        %90 = sbr.rel (%p87) target = $region12
      $region11: #{tpu_custom_call.1} parent=5 // pred_region
        %s91 = ssub.s32 %s11, 1
        // Predicated region
        $region13: #{tpu_custom_call.1} parent=11 // pred_check
          %p92 = pneg %p49
        $region14: #{tpu_custom_call.1} parent=11 // pred_check_branch
          %94 = sbr.rel (%p92) target = $region16
        $region15: #{tpu_custom_call.1} parent=11 // pred_region
          %s96 = ssub.s32 16, 16
          %97 = vsyncadd [#allocation3], %s96
          %s98 = smul.addr %s20, 16
          %s99 = scalar_lea.hbm %s0, %s98
          %s101 = sshll.u32 [#allocation2], 4
          %s102 = int_to_ptr.vmem [resolvable:$true] %s101
          %104 = dma.hbm_to_vmem [thread:$0]  %s99, 16, %s102, [#allocation3]
        $region16: #{tpu_custom_call.1} parent=11 // pred_fallthru
          _
      $region12: #{tpu_custom_call.1} parent=5 // pred_fallthru
        _
      %p105 = scmp.lt.s32.totalorder %s11, 3
      // Predicated region
      $region17: #{tpu_custom_call.1} parent=5 // pred_check
        %p106 = pneg %p105
      $region18: #{tpu_custom_call.1} parent=5 // pred_check_branch
        %108 = sbr.rel (%p106) target = $region20
      $region19: #{tpu_custom_call.1} parent=5 // pred_region
        _
      $region20: #{tpu_custom_call.1} parent=5 // pred_fallthru
        _
      %p109 = scmp.le.s32.totalorder 1, %s11
      %p110 = scmp.lt.s32.totalorder %s11, 4
      %p111 = pnand %p109, %p110
      %p112 = pneg %p111
      // Predicated region
      $region21: #{tpu_custom_call.1} parent=5 // pred_check
        _
      $region22: #{tpu_custom_call.1} parent=5 // pred_check_branch
        %114 = sbr.rel (%p111) target = $region24
      $region23: #{tpu_custom_call.1} parent=5 // pred_region
        %s115 = ssub.s32 %s11, 1
        // Predicated region
        $region25: #{tpu_custom_call.1} parent=23 // pred_check
          %p116 = pneg %p49
        $region26: #{tpu_custom_call.1} parent=23 // pred_check_branch
          %118 = sbr.rel (%p116) target = $region28
        $region27: #{tpu_custom_call.1} parent=23 // pred_region
          %119 = dma.done [#allocation3], 16
        $region28: #{tpu_custom_call.1} parent=23 // pred_fallthru
          _
        %p120 = pneg %p49
        %p121 = pneg %p46
        %p122 = pneg %p77
        %p123 = pneg %p74
        %s124 = sand.u32 %s64, 1
        %s125 = scalar_lea.sflag [#allocation4], %s124
        %s126 = sand.u32 %s64, 1
        %s127 = scalar_lea.vmem [#allocation5], %s126
        %v128 = vld [vmem:[#allocation2] sm:$0x1]
        %129 = vst [vmem:[%s127] sm:$0x1] %v128
        %s130 = sand.u32 %s64, 1
        %s131 = scalar_lea.sflag [#allocation4], %s130
        %s132 = sand.u32 %s64, 1
        %s133 = scalar_lea.vmem [#allocation5], %s132
        // Predicated region
        $region29: #{tpu_custom_call.1} parent=23 // pred_check
          %p134 = pneg %p74
        $region30: #{tpu_custom_call.1} parent=23 // pred_check_branch
          %136 = sbr.rel (%p134) target = $region32
        $region31: #{tpu_custom_call.1} parent=23 // pred_region
          %s138 = ssub.s32 16, 16
          %139 = vsyncadd %s131, %s138
          %s140 = sadd.s32 %s20, %s21
          %s141 = smul.addr %s140, 16
          %s142 = scalar_lea.hbm %s1, %s141
          %s144 = sshll.u32 %s133, 4
          %s145 = int_to_ptr.vmem [resolvable:$true] %s144
          %147 = dma.vmem_to_hbm [thread:$0]  %s145, 16, %s142, %s131
        $region32: #{tpu_custom_call.1} parent=23 // pred_fallthru
          _
      $region24: #{tpu_custom_call.1} parent=5 // pred_fallthru
        _
      %p148 = scmp.le.s32.totalorder 2, %s11
      // Predicated region
      $region33: #{tpu_custom_call.1} parent=5 // pred_check
        %p149 = pneg %p148
      $region34: #{tpu_custom_call.1} parent=5 // pred_check_branch
        %151 = sbr.rel (%p149) target = $region36
      $region35: #{tpu_custom_call.1} parent=5 // pred_region
        %s152 = ssub.s32 %s11, 2
        // Predicated region
        $region37: #{tpu_custom_call.1} parent=35 // pred_check
          %p153 = pneg %p80
        $region38: #{tpu_custom_call.1} parent=35 // pred_check_branch
          %155 = sbr.rel (%p153) target = $region40
        $region39: #{tpu_custom_call.1} parent=35 // pred_region
          %s156 = sand.u32 %s65, 1
          %s157 = scalar_lea.sflag [#allocation4], %s156
          %s158 = sand.u32 %s65, 1
          %s159 = scalar_lea.vmem [#allocation5], %s158
          %160 = dma.done %s157, 16
        $region40: #{tpu_custom_call.1} parent=35 // pred_fallthru
          _
      $region36: #{tpu_custom_call.1} parent=5 // pred_fallthru
        _
    $region6: #{tpu_custom_call.1} parent=1 // loop_footer
      %s15 = sadd.s32 1, %s11
    $region7: #{tpu_custom_call.1} parent=1 // loop_footer_branch
      %10 = sbr.rel target = $region3
    $region8: #{tpu_custom_call.1} parent=1 // loop_exit
      _
    %161 = vsyncpa [#allocation3], 1
    %s162 = scalar_lea.sflag [#allocation3], 1
    %163 = vsyncpa %s162, 1
    %164 = vsyncpa [#allocation4], 1
    %s165 = scalar_lea.sflag [#allocation4], 1
    %166 = vsyncpa %s165, 1

</llo_original>
